<compile_context>
chip_gen: v6e
topology: v6e:2x2x1
jax: 0.10.0
libtpu: 0.0.40
codegen_flags: <defaults>
</compile_context>

<pallas_src>
import jax
import jax.numpy as jnp
from jax import lax
from jax.experimental import pallas as pl
from jax.experimental.pallas import tpu as pltpu

KH = KW = 3
CIN = 3
COUT = 64
H = W = 12                    # 12 - 3 + 1 = 10 -> matches 64*10*10 in fc1
OH = OW = H - KH + 1          # 10
P = OH * OW                   # 100 conv output pixels
D = CIN * H * W               # 432 effective contraction length after the fold
NCLS = 10

MAX_BLOCK_B = 1024            # lanes per grid step (multiple of 128)


def _net_kernel(x_ref, w_ref, b_ref, out_ref):
    # x_ref  : (D, B)      flattened input, batch on the lane axis
    # w_ref  : (NCLS, D)   fused conv1+fc1 weight
    # b_ref  : (NCLS, 1)   fused bias (lane-broadcast)
    # out_ref: (NCLS, B)   logits block, lane-dense over the batch
    out_ref[...] = (
        jnp.dot(w_ref[...], x_ref[...], preferred_element_type=jnp.float32)
        + b_ref[...]
    )


def _fold_conv_into_fc(wconv, bconv, wfc, bfc):
    """Collapse conv1 followed by fc1 into a single affine map.

    y[n] = sum_{c,oh,ow} wfc[n,c,oh,ow] * (sum_{i,kh,kw} wconv[c,i,kh,kw]
                                           * x[i,oh+kh,ow+kw] + bconv[c]) + bfc[n]
         = sum_{i,h,w} W_eff[n,i,h,w] * x[i,h,w] + b_eff[n]
    """
    wconv = wconv.astype(jnp.float32)                    # (COUT, CIN, KH, KW)
    wfc4 = wfc.reshape(NCLS, COUT, OH, OW).astype(jnp.float32)
    w_eff = jnp.zeros((NCLS, CIN, H, W), jnp.float32)
    for kh in range(KH):
        for kw in range(KW):
            # contribution of tap (kh, kw): sum over the 64 conv channels
            contrib = jnp.einsum("ncpq,ci->nipq", wfc4, wconv[:, :, kh, kw])
            w_eff = w_eff.at[:, :, kh:kh + OH, kw:kw + OW].add(contrib)
    b_eff = bfc.astype(jnp.float32) + jnp.einsum(
        "ncpq,c->n", wfc4, bconv.astype(jnp.float32))
    return w_eff.reshape(NCLS, D), b_eff


def _round_up(n, m):
    return -(-n // m) * m


def _choose_block_b(n):
    """Batch lanes per grid step: multiple of 128, <= MAX_BLOCK_B.

    Shrink so there are >= 2 grid blocks when the batch allows (v7x has two
    TensorCores; v5e/v6e are unaffected).  VMEM per block is only
    ~1.7 KiB/sample, so the cap is about step-overhead amortization.
    """
    if _round_up(max(n, 1), 128) <= 128:
        return 128
    bb = MAX_BLOCK_B
    while bb > 128 and _round_up(n, bb) // bb < 2:
        bb //= 2
    return bb


@jax.jit
def net_forward(x, wconv, bconv, wfc, bfc):
    """x: (N, 3, 12, 12) f32; returns (N, 10) f32."""
    n = x.shape[0]
    block_b = _choose_block_b(n)
    nb = -(-n // block_b)
    n_pad = nb * block_b

    x = x.astype(jnp.float32).reshape(n, D)
    if n_pad != n:
        x = jnp.pad(x, ((0, n_pad - n), (0, 0)))
    x_t = x.T                                            # (D, n_pad): batch -> lane axis

    w_eff, b_eff = _fold_conv_into_fc(wconv, bconv, wfc, bfc)
    b_col = b_eff.reshape(NCLS, 1)

    # VMEM per step: x tile 432*B*4 B (<= ~1.7 MiB at B=1024, x2 buffers) +
    # ~17 KiB of weights -> far under every generation's scoped limit.
    out = pl.pallas_call(
        _net_kernel,
        out_shape=jax.ShapeDtypeStruct((NCLS, n_pad), jnp.float32),
        grid_spec=pltpu.PrefetchScalarGridSpec(
            num_scalar_prefetch=0,
            grid=(nb,),
            in_specs=[
                pl.BlockSpec((D, block_b), lambda i: (0, i)),
                pl.BlockSpec((NCLS, D), lambda i: (0, 0)),
                pl.BlockSpec((NCLS, 1), lambda i: (0, 0)),
            ],
            out_specs=pl.BlockSpec((NCLS, block_b), lambda i: (0, i)),
        ),
        compiler_params=pltpu.CompilerParams(
            dimension_semantics=("parallel",)),          # batch blocks shard across TCs
    )(x_t, w_eff, b_col)

    return out[:, :n].T                                  # (N, NCLS)


def _reference_forward(x, wconv, bconv, wfc, bfc):
    # Pure-JAX reference mirroring the PyTorch forward.
    conv = lax.conv_general_dilated(
        x, wconv, window_strides=(1, 1), padding="VALID",
        dimension_numbers=("NCHW", "OIHW", "NCHW"))      # (N, 64, 10, 10)
    conv = conv + bconv.reshape(1, COUT, 1, 1)
    flat = conv.reshape(x.shape[0], COUT * P)
    return flat @ wfc.T + bfc


if __name__ == "__main__":
    key = jax.random.PRNGKey(0)
    kx, kw1, kb1, kw2, kb2 = jax.random.split(key, 5)

    N = 2
    x = jax.random.normal(kx, (N, CIN, H, W), dtype=jnp.float32)

    # Deterministic parameter init (PyTorch-style uniform bounds).
    b1 = 1.0 / jnp.sqrt(float(CIN * KH * KW))
    wconv = jax.random.uniform(kw1, (COUT, CIN, KH, KW), jnp.float32, -b1, b1)
    bconv = jax.random.uniform(kb1, (COUT,), jnp.float32, -b1, b1)
    b2 = 1.0 / jnp.sqrt(float(COUT * P))
    wfc = jax.random.uniform(kw2, (NCLS, COUT * P), jnp.float32, -b2, b2)
    bfc = jax.random.uniform(kb2, (NCLS,), jnp.float32, -b2, b2)

    y = jax.block_until_ready(net_forward(x, wconv, bconv, wfc, bfc))
    y_ref = jax.block_until_ready(_reference_forward(x, wconv, bconv, wfc, bfc))

    assert y.shape == (N, NCLS)
    assert jnp.allclose(y, y_ref, atol=1e-4, rtol=1e-4), \
        float(jnp.max(jnp.abs(y - y_ref)))
    print("KERNEL_OK")
</pallas_src>

<mosaic_0001>
module attributes {stable_mosaic.version = 11 : i64} {
  func.func @_net_kernel(%arg0: i32, %arg1: memref<432x128xf32, #tpu.memory_space<vmem>>, %arg2: memref<10x432xf32, #tpu.memory_space<vmem>>, %arg3: memref<10x1xf32, #tpu.memory_space<vmem>>, %arg4: memref<10x128xf32, #tpu.memory_space<vmem>>) attributes {dimension_semantics = [#tpu.dimension_semantics<parallel>], iteration_bounds = array<i64: 1>, scalar_prefetch = 0 : i64, scratch_operands = 0 : i64, tpu.core_type = #tpu.core_type<tc>, window_params = [{transform_indices = @transform_0, window_bounds = array<i64: 432, 128>}, {pipeline_mode = #tpu.pipeline_mode<synchronous>, transform_indices = @transform_1, window_bounds = array<i64: 10, 432>}, {pipeline_mode = #tpu.pipeline_mode<synchronous>, transform_indices = @transform_2, window_bounds = array<i64: 10, 1>}, {transform_indices = @transform_3, window_bounds = array<i64: 10, 128>}]} {
    %c0 = arith.constant 0 : index
    %c0_0 = arith.constant 0 : index
    %0 = vector.load %arg2[%c0, %c0_0] : memref<10x432xf32, #tpu.memory_space<vmem>>, vector<10x432xf32>
    %c0_1 = arith.constant 0 : index
    %c0_2 = arith.constant 0 : index
    %1 = vector.load %arg1[%c0_1, %c0_2] : memref<432x128xf32, #tpu.memory_space<vmem>>, vector<432x128xf32>
    %cst = arith.constant dense<0.000000e+00> : vector<10x128xf32>
    %2 = tpu.matmul %0, %1, %cst {dimension_numbers = #tpu.dot_dimension_numbers<[1], [0], [0], [1], [0, 0, 1, 1], [], []>} : vector<10x432xf32>, vector<432x128xf32>, vector<10x128xf32> -> vector<10x128xf32>
    %c0_3 = arith.constant 0 : index
    %c0_4 = arith.constant 0 : index
    %3 = vector.load %arg3[%c0_3, %c0_4] : memref<10x1xf32, #tpu.memory_space<vmem>>, vector<10x1xf32>
    %4 = vector.broadcast %3 : vector<10x1xf32> to vector<10x128xf32>
    %5 = arith.addf %2, %4 : vector<10x128xf32>
    %c0_5 = arith.constant 0 : index
    %c0_6 = arith.constant 0 : index
    %6 = vector.load %arg4[%c0_5, %c0_6] : memref<10x128xf32, #tpu.memory_space<vmem>>, vector<10x128xf32>
    tpu.vector_store %arg4[%c0_5, %c0_6], %5 {strides = array<i32>} : memref<10x128xf32, #tpu.memory_space<vmem>>, vector<10x128xf32>,
    return
  }
  func.func @transform_0(%arg0: i32) -> (i32, i32) {
    %c0_i32 = arith.constant 0 : i32
    %c0_i32_0 = arith.constant 0 : i32
    return %c0_i32, %arg0 : i32, i32
  }
  func.func @transform_1(%arg0: i32) -> (i32, i32) {
    %c0_i32 = arith.constant 0 : i32
    %c0_i32_0 = arith.constant 0 : i32
    %c0_i32_1 = arith.constant 0 : i32
    return %c0_i32, %c0_i32_0 : i32, i32
  }
  func.func @transform_2(%arg0: i32) -> (i32, i32) {
    %c0_i32 = arith.constant 0 : i32
    %c0_i32_0 = arith.constant 0 : i32
    %c0_i32_1 = arith.constant 0 : i32
    return %c0_i32, %c0_i32_0 : i32, i32
  }
  func.func @transform_3(%arg0: i32) -> (i32, i32) {
    %c0_i32 = arith.constant 0 : i32
    %c0_i32_0 = arith.constant 0 : i32
    return %c0_i32, %arg0 : i32, i32
  }
}

</mosaic_0001>

<llo_original>
// kernel: net_forward.1
$region0: #{net_forward.1}
  #allocation0 [shape = 'u32[]', space=smem, size = 0x4, offset = 0x4, fixed_abs, tag = 'smem constant byte address 0x4 - core index']
  #allocation1 [shape = 'u32[144,128]{1,0:T(1,128)}', space=vmem, size = 0x12000, scoped, tag = 'internal scratch']
  %s0 = inlined_call_operand.vmem [shape: f32[432,128], index: 0, kind: input, shape index: {}]
  %s1 = inlined_call_operand.vmem [shape: f32[10,432], index: 1, kind: input, shape index: {}]
  %s2 = inlined_call_operand.vmem [shape: f32[10,1], index: 2, kind: input, shape index: {}]
  %s3 = inlined_call_operand.vmem [shape: f32[10,128], index: 3, kind: output, shape index: {}]
  %s4 = sld [smem:[#allocation0]]
  $region22: #{net_forward.1} parent=0
    _
  %s6 = ssub.s32 1, %s4
  %s7 = scalar_select 0, %s6, %s4
  // Predicated region
  $region2: #{net_forward.1} parent=0 // pred_check
    _
  $region3: #{net_forward.1} parent=0 // pred_check_branch
    %9 = sbr.rel (0) target = $region5
  $region4: #{net_forward.1} parent=0 // pred_region
    _
  $region5: #{net_forward.1} parent=0 // pred_fallthru
    _
  // Predicated region
  $region6: #{net_forward.1} parent=0 // pred_check
    _
  $region7: #{net_forward.1} parent=0 // pred_check_branch
    %11 = sbr.rel (0) target = $region9
  $region8: #{net_forward.1} parent=0 // pred_region
    _
  $region9: #{net_forward.1} parent=0 // pred_fallthru
    _
  // Predicated region
  $region10: #{net_forward.1} parent=0 // pred_check
    _
  $region11: #{net_forward.1} parent=0 // pred_check_branch
    %13 = sbr.rel (0) target = $region13
  $region12: #{net_forward.1} parent=0 // pred_region
    _
  $region13: #{net_forward.1} parent=0 // pred_fallthru
    _
  %v14 = vld [vmem:[%s1] sm:$0xff]
  %v15 = vld [vmem:[%s1 + $0x8] sm:$0xff]
  %v16 = vld [vmem:[%s1 + $0x10] sm:$0xff]
  %v17 = vld [vmem:[%s1 + $0x18] sm:$0xff]
  %v18 = vld [vmem:[%s1 + $0x20] sm:$0x3]
  %v19 = vld [vmem:[%s1 + $0x28] sm:$0x3]
  %v20 = vld [vmem:[%s1 + $0x30] sm:$0x3]
  %v21 = vld [vmem:[%s1 + $0x38] sm:$0x3]
  %v22 = vld [vmem:[%s0] sm:$0xff]
  %v23 = vld [vmem:[%s0 + $0x8] sm:$0xff]
  %v24 = vld [vmem:[%s0 + $0x10] sm:$0xff]
  %v25 = vld [vmem:[%s0 + $0x18] sm:$0xff]
  %v26 = vld [vmem:[%s0 + $0x20] sm:$0xff]
  %v27 = vld [vmem:[%s0 + $0x28] sm:$0xff]
  %v28 = vld [vmem:[%s0 + $0x30] sm:$0xff]
  %v29 = vld [vmem:[%s0 + $0x38] sm:$0xff]
  %v30 = vld [vmem:[%s0 + $0x40] sm:$0xff]
  %v31 = vld [vmem:[%s0 + $0x48] sm:$0xff]
  %v32 = vld [vmem:[%s0 + $0x50] sm:$0xff]
  %v33 = vld [vmem:[%s0 + $0x58] sm:$0xff]
  %v34 = vld [vmem:[%s0 + $0x60] sm:$0xff]
  %v35 = vld [vmem:[%s0 + $0x68] sm:$0xff]
  %v36 = vld [vmem:[%s0 + $0x70] sm:$0xff]
  %v37 = vld [vmem:[%s0 + $0x78] sm:$0xff]
  %v38 = vld [vmem:[%s0 + $0x80] sm:$0xff]
  %v39 = vld [vmem:[%s0 + $0x88] sm:$0xff]
  %v40 = vld [vmem:[%s0 + $0x90] sm:$0xff]
  %v41 = vld [vmem:[%s0 + $0x98] sm:$0xff]
  %v42 = vld [vmem:[%s0 + $0xa0] sm:$0xff]
  %v43 = vld [vmem:[%s0 + $0xa8] sm:$0xff]
  %v44 = vld [vmem:[%s0 + $0xb0] sm:$0xff]
  %v45 = vld [vmem:[%s0 + $0xb8] sm:$0xff]
  %v46 = vld [vmem:[%s0 + $0xc0] sm:$0xff]
  %v47 = vld [vmem:[%s0 + $0xc8] sm:$0xff]
  %v48 = vld [vmem:[%s0 + $0xd0] sm:$0xff]
  %v49 = vld [vmem:[%s0 + $0xd8] sm:$0xff]
  %v50 = vld [vmem:[%s0 + $0xe0] sm:$0xff]
  %v51 = vld [vmem:[%s0 + $0xe8] sm:$0xff]
  %v52 = vld [vmem:[%s0 + $0xf0] sm:$0xff]
  %v53 = vld [vmem:[%s0 + $0xf8] sm:$0xff]
  %v54 = vld [vmem:[%s0 + $0x100] sm:$0xff]
  %v55 = vld [vmem:[%s0 + $0x108] sm:$0xff]
  %v56 = vld [vmem:[%s0 + $0x110] sm:$0xff]
  %v57 = vld [vmem:[%s0 + $0x118] sm:$0xff]
  %v58 = vld [vmem:[%s0 + $0x120] sm:$0xff]
  %v59 = vld [vmem:[%s0 + $0x128] sm:$0xff]
  %v60 = vld [vmem:[%s0 + $0x130] sm:$0xff]
  %v61 = vld [vmem:[%s0 + $0x138] sm:$0xff]
  %v62 = vld [vmem:[%s0 + $0x140] sm:$0xff]
  %v63 = vld [vmem:[%s0 + $0x148] sm:$0xff]
  %v64 = vld [vmem:[%s0 + $0x150] sm:$0xff]
  %v65 = vld [vmem:[%s0 + $0x158] sm:$0xff]
  %v66 = vld [vmem:[%s0 + $0x160] sm:$0xff]
  %v67 = vld [vmem:[%s0 + $0x168] sm:$0xff]
  %v68 = vld [vmem:[%s0 + $0x170] sm:$0xff]
  %v69 = vld [vmem:[%s0 + $0x178] sm:$0xff]
  %v70 = vld [vmem:[%s0 + $0x180] sm:$0xff]
  %v71 = vld [vmem:[%s0 + $0x188] sm:$0xff]
  %v72 = vld [vmem:[%s0 + $0x190] sm:$0xff]
  %v73 = vld [vmem:[%s0 + $0x198] sm:$0xff]
  %v74 = vld [vmem:[%s0 + $0x1a0] sm:$0xff]
  %v75 = vld [vmem:[%s0 + $0x1a8] sm:$0xff]
  %v76 = vld [vmem:[%s2] sm:$0xff]
  %v77 = vld [vmem:[%s2 + $0x8] sm:$0x3]
  %79 = vset.pattern.permute.xlu0 0
  %80 = vperm.xlu0 %79, %v76
  %v81 = vpop.permute.xlu0 %80
  %84 = vset.pattern.permute.xlu0 0
  %85 = vperm.xlu0 %84, %v77
  %v86 = vpop.permute.xlu0 %85
  %vm88 = vcmask 392192
  %v90 = vsel %vm88, %v17, 0
  %v93 = vsel %vm88, %v21, 0
  %95 = vmatprep.subr.mxu0 0.0
  %96 = vmatpush1.msra.mxu0 %v37
  %97 = vmatprep.subr.mxu0 0.0
  %98 = vmatpush1.msra.mxu0 %v36
  %99 = vmatprep.subr.mxu0 0.0
  %100 = vmatpush1.msra.mxu0 %v35
  %101 = vmatprep.subr.mxu0 0.0
  %102 = vmatpush1.msra.mxu0 %v34
  %103 = vmatprep.subr.mxu0 0.0
  %104 = vmatpush1.msra.mxu0 %v33
  %105 = vmatprep.subr.mxu0 0.0
  %106 = vmatpush1.msra.mxu0 %v32
  %107 = vmatprep.subr.mxu0 0.0
  %108 = vmatpush1.msra.mxu0 %v31
  %109 = vmatprep.subr.mxu0 0.0
  %110 = vmatpush1.msra.mxu0 %v30
  %111 = vmatprep.subr.mxu0 0.0
  %112 = vmatpush1.msra.mxu0 %v29
  %113 = vmatprep.subr.mxu0 0.0
  %114 = vmatpush1.msra.mxu0 %v28
  %115 = vmatprep.subr.mxu0 0.0
  %116 = vmatpush1.msra.mxu0 %v27
  %117 = vmatprep.subr.mxu0 0.0
  %118 = vmatpush1.msra.mxu0 %v26
  %119 = vmatprep.subr.mxu0 0.0
  %120 = vmatpush1.msra.mxu0 %v25
  %121 = vmatprep.subr.mxu0 0.0
  %122 = vmatpush1.msra.mxu0 %v24
  %123 = vmatprep.subr.mxu0 0.0
  %124 = vmatpush1.msra.mxu0 %v23
  %125 = vmatprep.subr.mxu0 0.0
  %126 = vmatpush1.msra.mxu0 %v22
  %127 = vmatprep.subr.mxu0 0.0
  %128 = vmatpush2.msra.mxu0 %v53
  %129 = vmatprep.subr.mxu0 0.0
  %130 = vmatpush2.msra.mxu0 %v52
  %131 = vmatprep.subr.mxu0 0.0
  %132 = vmatpush2.msra.mxu0 %v51
  %133 = vmatprep.subr.mxu0 0.0
  %134 = vmatpush2.msra.mxu0 %v50
  %135 = vmatprep.subr.mxu0 0.0
  %136 = vmatpush2.msra.mxu0 %v49
  %137 = vmatprep.subr.mxu0 0.0
  %138 = vmatpush2.msra.mxu0 %v48
  %139 = vmatprep.subr.mxu0 0.0
  %140 = vmatpush2.msra.mxu0 %v47
  %141 = vmatprep.subr.mxu0 0.0
  %142 = vmatpush2.msra.mxu0 %v46
  %143 = vmatprep.subr.mxu0 0.0
  %144 = vmatpush2.msra.mxu0 %v45
  %145 = vmatprep.subr.mxu0 0.0
  %146 = vmatpush2.msra.mxu0 %v44
  %147 = vmatprep.subr.mxu0 0.0
  %148 = vmatpush2.msra.mxu0 %v43
  %149 = vmatprep.subr.mxu0 0.0
  %150 = vmatpush2.msra.mxu0 %v42
  %151 = vmatprep.subr.mxu0 0.0
  %152 = vmatpush2.msra.mxu0 %v41
  %153 = vmatprep.subr.mxu0 0.0
  %154 = vmatpush2.msra.mxu0 %v40
  %155 = vmatprep.subr.mxu0 0.0
  %156 = vmatpush2.msra.mxu0 %v39
  %157 = vmatprep.subr.mxu0 0.0
  %158 = vmatpush2.msra.mxu0 %v38
  %159 = vmatprep.mubr.f32.mxu0 %v15
  %160 = vmatmul.mubr.f32.gmra.mxu0 %v14
  %v161 = vpop.f32.mrf.mxu0
  %v162 = vadd.f32 %v81, %v161
  %v163 = vpop.f32.mrf.mxu0
  %164 = vmatprep.mubr.f32.mxu0 %v19
  %165 = vmatmul.mubr.f32.gmra.mxu0 %v18
  %v166 = vpop.f32.mrf.mxu0
  %v167 = vadd.f32 %v86, %v166
  %v168 = vpop.f32.mrf.mxu0
  %169 = vdwg.mxu0
  %170 = vmatprep.subr.mxu0 0.0
  %171 = vmatpush1.msra.mxu0 %v69
  %172 = vmatprep.subr.mxu0 0.0
  %173 = vmatpush1.msra.mxu0 %v68
  %174 = vmatprep.subr.mxu0 0.0
  %175 = vmatpush1.msra.mxu0 %v67
  %176 = vmatprep.subr.mxu0 0.0
  %177 = vmatpush1.msra.mxu0 %v66
  %178 = vmatprep.subr.mxu0 0.0
  %179 = vmatpush1.msra.mxu0 %v65
  %180 = vmatprep.subr.mxu0 0.0
  %181 = vmatpush1.msra.mxu0 %v64
  %182 = vmatprep.subr.mxu0 0.0
  %183 = vmatpush1.msra.mxu0 %v63
  %184 = vmatprep.subr.mxu0 0.0
  %185 = vmatpush1.msra.mxu0 %v62
  %186 = vmatprep.subr.mxu0 0.0
  %187 = vmatpush1.msra.mxu0 %v61
  %188 = vmatprep.subr.mxu0 0.0
  %189 = vmatpush1.msra.mxu0 %v60
  %190 = vmatprep.subr.mxu0 0.0
  %191 = vmatpush1.msra.mxu0 %v59
  %192 = vmatprep.subr.mxu0 0.0
  %193 = vmatpush1.msra.mxu0 %v58
  %194 = vmatprep.subr.mxu0 0.0
  %195 = vmatpush1.msra.mxu0 %v57
  %196 = vmatprep.subr.mxu0 0.0
  %197 = vmatpush1.msra.mxu0 %v56
  %198 = vmatprep.subr.mxu0 0.0
  %199 = vmatpush1.msra.mxu0 %v55
  %200 = vmatprep.subr.mxu0 0.0
  %201 = vmatpush1.msra.mxu0 %v54
  %202 = vmatprep.subr.mxu0 0.0
  %203 = vmatpush2.msra.mxu0 0.0
  %204 = vmatprep.subr.mxu0 0.0
  %205 = vmatpush2.msra.mxu0 0.0
  %206 = vmatprep.subr.mxu0 0.0
  %207 = vmatpush2.msra.mxu0 0.0
  %208 = vmatprep.subr.mxu0 0.0
  %209 = vmatpush2.msra.mxu0 0.0
  %210 = vmatprep.subr.mxu0 0.0
  %211 = vmatpush2.msra.mxu0 0.0
  %212 = vmatprep.subr.mxu0 0.0
  %213 = vmatpush2.msra.mxu0 0.0
  %214 = vmatprep.subr.mxu0 0.0
  %215 = vmatpush2.msra.mxu0 0.0
  %216 = vmatprep.subr.mxu0 0.0
  %217 = vmatpush2.msra.mxu0 0.0
  %218 = vmatprep.subr.mxu0 0.0
  %219 = vmatpush2.msra.mxu0 0.0
  %220 = vmatprep.subr.mxu0 0.0
  %221 = vmatpush2.msra.mxu0 0.0
  %222 = vmatprep.subr.mxu0 0.0
  %223 = vmatpush2.msra.mxu0 %v75
  %224 = vmatprep.subr.mxu0 0.0
  %225 = vmatpush2.msra.mxu0 %v74
  %226 = vmatprep.subr.mxu0 0.0
  %227 = vmatpush2.msra.mxu0 %v73
  %228 = vmatprep.subr.mxu0 0.0
  %229 = vmatpush2.msra.mxu0 %v72
  %230 = vmatprep.subr.mxu0 0.0
  %231 = vmatpush2.msra.mxu0 %v71
  %232 = vmatprep.subr.mxu0 0.0
  %233 = vmatpush2.msra.mxu0 %v70
  %234 = vmatprep.mubr.f32.mxu0 %v90
  %235 = vmatmul.mubr.f32.gmra.mxu0 %v16
  %v236 = vpop.f32.mrf.mxu0
  %v237 = vadd.f32 %v162, %v236
  %v238 = vpop.f32.mrf.mxu0
  %239 = vmatprep.mubr.f32.mxu0 %v93
  %240 = vmatmul.mubr.f32.gmra.mxu0 %v20
  %v241 = vpop.f32.mrf.mxu0
  %v242 = vadd.f32 %v167, %v241
  %v243 = vpop.f32.mrf.mxu0
  %244 = vdwg.mxu0
  %245 = vst [vmem:[%s3] sm:$0xff] %v237
  %246 = vst [vmem:[%s3 + $0x8] sm:$0x3] %v242
  // Predicated region
  $region14: #{net_forward.1} parent=0 // pred_check
    _
  $region15: #{net_forward.1} parent=0 // pred_check_branch
    %248 = sbr.rel (0) target = $region17
  $region16: #{net_forward.1} parent=0 // pred_region
    _
  $region17: #{net_forward.1} parent=0 // pred_fallthru
    _
  // Predicated region
  $region18: #{net_forward.1} parent=0 // pred_check
    _
  $region19: #{net_forward.1} parent=0 // pred_check_branch
    %250 = sbr.rel (0) target = $region21
  $region20: #{net_forward.1} parent=0 // pred_region
    _
  $region21: #{net_forward.1} parent=0 // pred_fallthru
    _

</llo_original>
